<compile_context>
chip_gen: v7x
topology: tpu7x:2x2x1
jax: 0.10.0
libtpu: 0.0.40
codegen_flags: <defaults>
</compile_context>

<pallas_src>
import jax
import jax.numpy as jnp
from jax import lax
from jax.experimental import pallas as pl
from jax.experimental.pallas import tpu as pltpu

EPS = 1e-12


def _round_up(x, m):
    return (x + m - 1) // m * m


# ---------------------------------------------------------------------------
# Kernel 1: one power iteration on W (cold path, tiny, un-gridded).
#   v       = normalize(W^T u)
#   Wv      = W v                    (kept as a (1, out) row; no transposes)
#   u_new   = Wv / ||Wv||
#   sigma   = u_new . Wv = ||Wv||    -> emit inv_sigma = rsqrt(||Wv||^2)
# ---------------------------------------------------------------------------
def power_iter_kernel(w_ref, u_ref, u_new_ref, inv_sigma_ref):
    w = w_ref[...]                                                 # (out, in)
    u = u_ref[...]                                                 # (1, out)

    v = jnp.dot(u, w, preferred_element_type=jnp.float32)          # (1, in) ~ W^T u
    v = v * lax.rsqrt(jnp.maximum(jnp.sum(v * v, keepdims=True), EPS * EPS))

    # (W v) as a row vector: contract v and W on the shared `in` axis.
    wv = lax.dot_general(v, w, dimension_numbers=(((1,), (1,)), ((), ())),
                         preferred_element_type=jnp.float32)       # (1, out)
    inv_norm = lax.rsqrt(jnp.maximum(jnp.sum(wv * wv, keepdims=True), EPS * EPS))

    u_new_ref[...] = wv * inv_norm            # normalize(W v)
    inv_sigma_ref[...] = inv_norm             # sigma == ||W v||  =>  1/sigma


# ---------------------------------------------------------------------------
# Kernel 2: tiled hot path  y = (x @ W^T) * inv_sigma + b
# grid = (B/TM, OUT/TN, IN/TK); f32 accumulator lives across the k axis.
# ---------------------------------------------------------------------------
def sn_matmul_kernel(inv_sigma_ref, x_ref, w_ref, b_ref, o_ref, acc_ref):
    k = pl.program_id(2)

    @pl.when(k == 0)
    def _():
        acc_ref[...] = jnp.zeros_like(acc_ref)

    # x (TM, TK) contracted with W (TN, TK) on the shared `in` axis -> (TM, TN).
    acc_ref[...] += lax.dot_general(
        x_ref[...], w_ref[...],
        dimension_numbers=(((1,), (1,)), ((), ())),
        preferred_element_type=jnp.float32)

    @pl.when(k == pl.num_programs(2) - 1)
    def _():
        inv_sigma = inv_sigma_ref[0, 0]        # SMEM scalar, applied once per tile
        o_ref[...] = (acc_ref[...] * inv_sigma + b_ref[...]).astype(o_ref.dtype)


@jax.jit
def spectral_norm_linear(x, w, u, b):
    B, in_f = x.shape
    out_f = w.shape[0]

    # ---- power iteration: computed once per call, outside the hot path ----
    # Whole W in VMEM is fine here; this kernel is tiny and runs once per call.
    # TODO(synk): tile the power iteration if out_f*in_f ever exceeds VMEM.
    w_bytes = out_f * in_f * jnp.dtype(w.dtype).itemsize
    u_new, inv_sigma = pl.pallas_call(
        power_iter_kernel,
        out_shape=(jax.ShapeDtypeStruct((1, out_f), jnp.float32),
                   jax.ShapeDtypeStruct((1, 1), jnp.float32)),
        in_specs=[pl.BlockSpec(memory_space=pltpu.MemorySpace.VMEM)] * 2,
        out_specs=(pl.BlockSpec(memory_space=pltpu.MemorySpace.VMEM),
                   pl.BlockSpec(memory_space=pltpu.MemorySpace.VMEM)),
        compiler_params=pltpu.CompilerParams(
            vmem_limit_bytes=int(min(56 << 20, max(16 << 20, 4 * w_bytes)))),
    )(w, u)

    # ---- tile sizes: lane-dense (multiples of 128) and VMEM-safe on v7x ----
    # Budget (f32, worst case TM=256, TN=512, TK=512, double-buffered inputs):
    #   x 2*0.5MB + w 2*1MB + acc 0.5MB + out 2*0.5MB ~= 4.5MB  << 32MB scoped.
    TM = min(256, _round_up(B, 8))
    TN = min(512, _round_up(out_f, 128))
    TK = min(512, _round_up(in_f, 128))

    Bp = _round_up(B, TM)
    OUTp = _round_up(out_f, TN)
    INp = _round_up(in_f, TK)

    xp = x if (Bp == B and INp == in_f) else jnp.pad(x, ((0, Bp - B), (0, INp - in_f)))
    wp = w if (OUTp == out_f and INp == in_f) else jnp.pad(
        w, ((0, OUTp - out_f), (0, INp - in_f)))
    bp = b if OUTp == out_f else jnp.pad(b, ((0, 0), (0, OUTp - out_f)))

    grid = (Bp // TM, OUTp // TN, INp // TK)

    y = pl.pallas_call(
        sn_matmul_kernel,
        out_shape=jax.ShapeDtypeStruct((Bp, OUTp), x.dtype),
        grid_spec=pltpu.PrefetchScalarGridSpec(
            num_scalar_prefetch=0,
            grid=grid,
            in_specs=[
                pl.BlockSpec(memory_space=pltpu.MemorySpace.SMEM),      # inv_sigma (1,1)
                pl.BlockSpec((TM, TK), lambda i, j, k: (i, k)),         # x tile
                pl.BlockSpec((TN, TK), lambda i, j, k: (j, k)),         # W tile (native layout)
                pl.BlockSpec((1, TN), lambda i, j, k: (0, j)),          # bias tile
            ],
            out_specs=pl.BlockSpec((TM, TN), lambda i, j, k: (i, j)),
            scratch_shapes=[pltpu.VMEM((TM, TN), jnp.float32)],
        ),
        compiler_params=pltpu.CompilerParams(
            dimension_semantics=("parallel", "parallel", "arbitrary")),
    )(inv_sigma, xp, wp, bp)

    return y[:B, :out_f], u_new


def reference(x, w, u, b):
    v = u @ w
    v = v / jnp.maximum(jnp.linalg.norm(v), EPS)
    wv = w @ v.T
    u_new = wv.T / jnp.maximum(jnp.linalg.norm(wv), EPS)
    sigma = jnp.sum(u_new * wv.T)
    return x @ (w / sigma).T + b, u_new


if __name__ == "__main__":
    batch, in_features, out_features = 8, 32, 16

    key = jax.random.PRNGKey(0)
    kx, kw, kb, ku = jax.random.split(key, 4)

    x = jax.random.normal(kx, (batch, in_features), dtype=jnp.float32)
    # Deterministic synthetic init (shapes match nn.Linear(in_features, out_features)).
    bound = 1.0 / jnp.sqrt(in_features)
    w = jax.random.uniform(kw, (out_features, in_features), jnp.float32, -bound, bound)
    b = jax.random.uniform(kb, (1, out_features), jnp.float32, -bound, bound)
    # spectral_norm init: u ~ N(0, 1), normalized.
    u = jax.random.normal(ku, (1, out_features), dtype=jnp.float32)
    u = u / jnp.maximum(jnp.linalg.norm(u), EPS)

    y, u_new = spectral_norm_linear(x, w, u, b)
    jax.block_until_ready((y, u_new))

    y_ref, u_new_ref = reference(x, w, u, b)
    assert y.shape == (batch, out_features)
    assert jnp.allclose(y, y_ref, atol=1e-4, rtol=1e-4), "output mismatch vs reference"
    assert jnp.allclose(u_new, u_new_ref, atol=1e-4, rtol=1e-4), "u_new mismatch vs reference"

    print("KERNEL_OK")
</pallas_src>

<mosaic_0001>
module attributes {stable_mosaic.version = 11 : i64} {
  func.func @power_iter_kernel(%arg0: memref<16x32xf32, #tpu.memory_space<vmem>>, %arg1: memref<1x16xf32, #tpu.memory_space<vmem>>, %arg2: memref<1x16xf32, #tpu.memory_space<vmem>>, %arg3: memref<1x1xf32, #tpu.memory_space<vmem>>) attributes {dimension_semantics = [], scalar_prefetch = 0 : i64, scratch_operands = 0 : i64, tpu.core_type = #tpu.core_type<tc>} {
    %c0 = arith.constant 0 : index
    %c0_0 = arith.constant 0 : index
    %0 = vector.load %arg0[%c0, %c0_0] : memref<16x32xf32, #tpu.memory_space<vmem>>, vector<16x32xf32>
    %c0_1 = arith.constant 0 : index
    %c0_2 = arith.constant 0 : index
    %1 = vector.load %arg1[%c0_1, %c0_2] : memref<1x16xf32, #tpu.memory_space<vmem>>, vector<1x16xf32>
    %cst = arith.constant dense<0.000000e+00> : vector<1x32xf32>
    %2 = tpu.matmul %1, %0, %cst {dimension_numbers = #tpu.dot_dimension_numbers<[1], [0], [0], [1], [0, 0, 1, 1], [], []>} : vector<1x16xf32>, vector<16x32xf32>, vector<1x32xf32> -> vector<1x32xf32>
    %3 = arith.mulf %2, %2 : vector<1x32xf32>
    %4 = vector.shape_cast %3 : vector<1x32xf32> to vector<1x1x32xf32>
    %cst_3 = arith.constant dense<0.000000e+00> : vector<1xf32>
    %5 = vector.multi_reduction <add>, %4, %cst_3 [1, 2] : vector<1x1x32xf32> to vector<1xf32>
    %6 = vector.shape_cast %5 : vector<1xf32> to vector<1x1x1xf32>
    %7 = vector.extract %6[0, 0, 0] : f32 from vector<1x1x1xf32>
    %8 = vector.broadcast %7 : f32 to vector<1x1xf32>
    %cst_4 = arith.constant 1.000000e-24 : f32
    %9 = vector.broadcast %cst_4 : f32 to vector<1x1xf32>
    %10 = arith.maximumf %8, %9 : vector<1x1xf32>
    %11 = math.rsqrt %10 : vector<1x1xf32>
    %12 = vector.broadcast %11 : vector<1x1xf32> to vector<1x32xf32>
    %13 = arith.mulf %2, %12 : vector<1x32xf32>
    %cst_5 = arith.constant dense<0.000000e+00> : vector<1x16xf32>
    %14 = tpu.matmul %13, %0, %cst_5 {dimension_numbers = #tpu.dot_dimension_numbers<[1], [1], [0], [0], [0, 0, 1, 0], [], []>} : vector<1x32xf32>, vector<16x32xf32>, vector<1x16xf32> -> vector<1x16xf32>
    %15 = arith.mulf %14, %14 : vector<1x16xf32>
    %16 = vector.shape_cast %15 : vector<1x16xf32> to vector<1x1x16xf32>
    %cst_6 = arith.constant dense<0.000000e+00> : vector<1xf32>
    %17 = vector.multi_reduction <add>, %16, %cst_6 [1, 2] : vector<1x1x16xf32> to vector<1xf32>
    %18 = vector.shape_cast %17 : vector<1xf32> to vector<1x1x1xf32>
    %19 = vector.extract %18[0, 0, 0] : f32 from vector<1x1x1xf32>
    %20 = vector.broadcast %19 : f32 to vector<1x1xf32>
    %cst_7 = arith.constant 1.000000e-24 : f32
    %21 = vector.broadcast %cst_7 : f32 to vector<1x1xf32>
    %22 = arith.maximumf %20, %21 : vector<1x1xf32>
    %23 = math.rsqrt %22 : vector<1x1xf32>
    %24 = vector.broadcast %23 : vector<1x1xf32> to vector<1x16xf32>
    %25 = arith.mulf %14, %24 : vector<1x16xf32>
    %c0_8 = arith.constant 0 : index
    %c0_9 = arith.constant 0 : index
    %26 = vector.load %arg2[%c0_8, %c0_9] : memref<1x16xf32, #tpu.memory_space<vmem>>, vector<1x16xf32>
    tpu.vector_store %arg2[%c0_8, %c0_9], %25 {strides = array<i32>} : memref<1x16xf32, #tpu.memory_space<vmem>>, vector<1x16xf32>,
    %c0_10 = arith.constant 0 : index
    %c0_11 = arith.constant 0 : index
    %27 = vector.load %arg3[%c0_10, %c0_11] : memref<1x1xf32, #tpu.memory_space<vmem>>, vector<1x1xf32>
    tpu.vector_store %arg3[%c0_10, %c0_11], %23 {strides = array<i32>} : memref<1x1xf32, #tpu.memory_space<vmem>>, vector<1x1xf32>,
    return
  }
}

module attributes {stable_mosaic.version = 11 : i64} {
  func.func @sn_matmul_kernel(%arg0: i32, %arg1: i32, %arg2: i32, %arg3: memref<1x1xf32, #tpu.memory_space<smem>>, %arg4: memref<8x128xf32, #tpu.memory_space<vmem>>, %arg5: memref<128x128xf32, #tpu.memory_space<vmem>>, %arg6: memref<1x128xf32, #tpu.memory_space<vmem>>, %arg7: memref<8x128xf32, #tpu.memory_space<vmem>>, %arg8: memref<8x128xf32, #tpu.memory_space<vmem>>) attributes {dimension_semantics = [#tpu.dimension_semantics<parallel>, #tpu.dimension_semantics<parallel>, #tpu.dimension_semantics<arbitrary>], iteration_bounds = array<i64: 1, 1, 1>, scalar_prefetch = 0 : i64, scratch_operands = 1 : i64, tpu.core_type = #tpu.core_type<tc>, window_params = [{transform_indices = @transform_0, window_bounds = array<i64: 1, 1>}, {transform_indices = @transform_1, window_bounds = array<i64: 8, 128>}, {transform_indices = @transform_2, window_bounds = array<i64: 128, 128>}, {transform_indices = @transform_3, window_bounds = array<i64: 1, 128>}, {transform_indices = @transform_4, window_bounds = array<i64: 8, 128>}]} {
    %c0_i32 = arith.constant 0 : i32
    %0 = arith.cmpi eq, %arg2, %c0_i32 : i32
    %1 = arith.extui %0 : i1 to i32
    %c0_i32_0 = arith.constant 0 : i32
    %2 = arith.cmpi ne, %1, %c0_i32_0 : i32
    scf.if %2 {
      %cst_10 = arith.constant 0.000000e+00 : f32
      %12 = vector.broadcast %cst_10 : f32 to vector<8x128xf32>
      %c0_11 = arith.constant 0 : index
      %c0_12 = arith.constant 0 : index
      %13 = vector.load %arg8[%c0_11, %c0_12] : memref<8x128xf32, #tpu.memory_space<vmem>>, vector<8x128xf32>
      tpu.vector_store %arg8[%c0_11, %c0_12], %12 {strides = array<i32>} : memref<8x128xf32, #tpu.memory_space<vmem>>, vector<8x128xf32>,
    } else {
    }
    %c0 = arith.constant 0 : index
    %c0_1 = arith.constant 0 : index
    %3 = vector.load %arg8[%c0, %c0_1] : memref<8x128xf32, #tpu.memory_space<vmem>>, vector<8x128xf32>
    %c0_2 = arith.constant 0 : index
    %c0_3 = arith.constant 0 : index
    %4 = vector.load %arg4[%c0_2, %c0_3] : memref<8x128xf32, #tpu.memory_space<vmem>>, vector<8x128xf32>
    %c0_4 = arith.constant 0 : index
    %c0_5 = arith.constant 0 : index
    %5 = vector.load %arg5[%c0_4, %c0_5] : memref<128x128xf32, #tpu.memory_space<vmem>>, vector<128x128xf32>
    %cst = arith.constant dense<0.000000e+00> : vector<8x128xf32>
    %6 = tpu.matmul %4, %5, %cst {dimension_numbers = #tpu.dot_dimension_numbers<[1], [1], [0], [0], [0, 0, 1, 0], [], []>} : vector<8x128xf32>, vector<128x128xf32>, vector<8x128xf32> -> vector<8x128xf32>
    %7 = arith.addf %3, %6 : vector<8x128xf32>
    %c0_6 = arith.constant 0 : index
    %c0_7 = arith.constant 0 : index
    %8 = vector.load %arg8[%c0_6, %c0_7] : memref<8x128xf32, #tpu.memory_space<vmem>>, vector<8x128xf32>
    tpu.vector_store %arg8[%c0_6, %c0_7], %7 {strides = array<i32>} : memref<8x128xf32, #tpu.memory_space<vmem>>, vector<8x128xf32>,
    %c0_i32_8 = arith.constant 0 : i32
    %9 = arith.cmpi eq, %arg2, %c0_i32_8 : i32
    %10 = arith.extui %9 : i1 to i32
    %c0_i32_9 = arith.constant 0 : i32
    %11 = arith.cmpi ne, %10, %c0_i32_9 : i32
    scf.if %11 {
      %c0_10 = arith.constant 0 : index
      %c0_11 = arith.constant 0 : index
      %12 = memref.load %arg3[%c0_10, %c0_11] : memref<1x1xf32, #tpu.memory_space<smem>>
      %c0_12 = arith.constant 0 : index
      %c0_13 = arith.constant 0 : index
      %13 = vector.load %arg8[%c0_12, %c0_13] : memref<8x128xf32, #tpu.memory_space<vmem>>, vector<8x128xf32>
      %14 = vector.broadcast %12 : f32 to vector<8x128xf32>
      %15 = arith.mulf %13, %14 : vector<8x128xf32>
      %c0_14 = arith.constant 0 : index
      %c0_15 = arith.constant 0 : index
      %16 = vector.load %arg6[%c0_14, %c0_15] : memref<1x128xf32, #tpu.memory_space<vmem>>, vector<1x128xf32>
      %17 = vector.broadcast %16 : vector<1x128xf32> to vector<8x128xf32>
      %18 = arith.addf %15, %17 : vector<8x128xf32>
      %c0_16 = arith.constant 0 : index
      %c0_17 = arith.constant 0 : index
      %19 = vector.load %arg7[%c0_16, %c0_17] : memref<8x128xf32, #tpu.memory_space<vmem>>, vector<8x128xf32>
      tpu.vector_store %arg7[%c0_16, %c0_17], %18 {strides = array<i32>} : memref<8x128xf32, #tpu.memory_space<vmem>>, vector<8x128xf32>,
    } else {
    }
    return
  }
  func.func @transform_0(%arg0: i32, %arg1: i32, %arg2: i32) -> (i32, i32) {
    %c0_i32 = arith.constant 0 : i32
    %c0_i32_0 = arith.constant 0 : i32
    %c0_i32_1 = arith.constant 0 : i32
    return %c0_i32, %c0_i32_0 : i32, i32
  }
  func.func @transform_1(%arg0: i32, %arg1: i32, %arg2: i32) -> (i32, i32) {
    %c0_i32 = arith.constant 0 : i32
    return %arg0, %arg2 : i32, i32
  }
  func.func @transform_2(%arg0: i32, %arg1: i32, %arg2: i32) -> (i32, i32) {
    %c0_i32 = arith.constant 0 : i32
    return %arg1, %arg2 : i32, i32
  }
  func.func @transform_3(%arg0: i32, %arg1: i32, %arg2: i32) -> (i32, i32) {
    %c0_i32 = arith.constant 0 : i32
    %c0_i32_0 = arith.constant 0 : i32
    return %c0_i32, %arg1 : i32, i32
  }
  func.func @transform_4(%arg0: i32, %arg1: i32, %arg2: i32) -> (i32, i32) {
    %c0_i32 = arith.constant 0 : i32
    return %arg0, %arg1 : i32, i32
  }
}

</mosaic_0001>

<llo_original>
// kernel: spectral_norm_linear.2
$region0: #{spectral_norm_linear.2}
  #allocation0 [shape = 'u32[]', space=smem, size = 0x4, offset = 0x4, fixed_abs, tag = 'smem constant byte address 0x4 - core index']
  #allocation1 [shape = 'u32[144,128]{1,0:T(1,128)}', space=vmem, size = 0x12000, scoped, tag = 'internal scratch']
  %s0 = inlined_call_operand.hbm [shape: f32[16,32], index: 0, kind: input, shape index: {}]
  %s1 = inlined_call_operand.vmem [shape: f32[1,16], index: 1, kind: input, shape index: {}]
  %s2 = inlined_call_operand.hbm [shape: f32[1,16], index: 2, kind: output, shape index: {0}]
  %s3 = inlined_call_operand.hbm [shape: f32[1,1], index: 3, kind: output, shape index: {1}]
  %4 = xla_tuple %s2, %s3
  %s5 = sld [smem:[#allocation0]]
  $region30: #{spectral_norm_linear.2} parent=0
    _
  %s7 = ssub.s32 1, %s5
  %s8 = scalar_select 0, %s7, %s5
  $region1: #{spectral_norm_linear.2} parent=0
    #allocation2 [shape = 'u8[8192]{0}', space=vmem, size = 0x2000, scoped, tag = 'input window, operand 0, single buffered']
    #allocation3 [shape = 's32[1]{0}', space=sflag, size = 0x4, scoped, tag = 'scoped memory for spectral_norm_linear.2']
    #allocation4 [shape = 's32[1]{0}', space=sflag, size = 0x4, scoped, tag = 'scoped memory for spectral_norm_linear.2']
    #allocation5 [shape = 'u8[512]{0}', space=vmem, size = 0x400, scoped, tag = 'output window, operand 0, single buffered']
    #allocation6 [shape = 'u8[512]{0}', space=vmem, size = 0x400, scoped, tag = 'output window, operand 1, single buffered']
    #allocation7 [shape = 's32[1]{0}', space=sflag, size = 0x4, scoped, tag = 'scoped memory for spectral_norm_linear.2']
    %9 = vsyncpa [#allocation3], 0
    %10 = vsyncpa [#allocation4], 0
    %11 = vsyncpa [#allocation7], 0
    // Predicated region
    $region2: #{spectral_norm_linear.2} parent=1 // pred_check
      _
    $region3: #{spectral_norm_linear.2} parent=1 // pred_check_branch
      %13 = sbr.rel (0) target = $region5
    $region4: #{spectral_norm_linear.2} parent=1 // pred_region
      %s15 = ssub.s32 256, 256
      %16 = vsyncadd [#allocation3], %s15
      %s17 = sshll.u32 [#allocation2], 4
      %s18 = int_to_ptr.vmem [resolvable:$true] %s17
      %23 = dma.hbm_to_vmem [thread:$0]  %s0, 256, %s18, [#allocation3], 128, 128, 8
    $region5: #{spectral_norm_linear.2} parent=1 // pred_fallthru
      _
    // Predicated region
    $region6: #{spectral_norm_linear.2} parent=1 // pred_check
      _
    $region7: #{spectral_norm_linear.2} parent=1 // pred_check_branch
      %25 = sbr.rel (0) target = $region9
    $region8: #{spectral_norm_linear.2} parent=1 // pred_region
      _
    $region9: #{spectral_norm_linear.2} parent=1 // pred_fallthru
      _
    // Predicated region
    $region10: #{spectral_norm_linear.2} parent=1 // pred_check
      _
    $region11: #{spectral_norm_linear.2} parent=1 // pred_check_branch
      %27 = sbr.rel (0) target = $region13
    $region12: #{spectral_norm_linear.2} parent=1 // pred_region
      %28 = dma.done [#allocation3], 256
    $region13: #{spectral_norm_linear.2} parent=1 // pred_fallthru
      _
    %v29 = vld [vmem:[#allocation2] sm:$0xff]
    %v30 = vld [vmem:[#allocation2 + $0x8] sm:$0xff]
    %v31 = vld [vmem:[%s1] sm:$0x1]
    %vm32 = vcmask 130048
    %v34 = vsel %vm32, %v31, 0
    %36 = vmatprep.subr.mxu0 0.0
    %37 = vmatpush1.msra.mxu0 %v29
    %38 = vmatprep.subr.mxu0 0.0
    %39 = vmatpush1.msra.mxu0 %v30
    %40 = vmatprep.subr.mxu0 0.0
    %41 = vmatpush1.msra.mxu0 0.0
    %42 = vmatprep.subr.mxu0 0.0
    %43 = vmatpush1.msra.mxu0 0.0
    %44 = vmatprep.subr.mxu0 0.0
    %45 = vmatpush1.msra.mxu0 0.0
    %46 = vmatprep.subr.mxu0 0.0
    %47 = vmatpush1.msra.mxu0 0.0
    %48 = vmatprep.subr.mxu0 0.0
    %49 = vmatpush1.msra.mxu0 0.0
    %50 = vmatprep.subr.mxu0 0.0
    %51 = vmatpush1.msra.mxu0 0.0
    %52 = vmatprep.subr.mxu0 0.0
    %53 = vmatpush1.msra.mxu0 0.0
    %54 = vmatprep.subr.mxu0 0.0
    %55 = vmatpush1.msra.mxu0 0.0
    %56 = vmatprep.subr.mxu0 0.0
    %57 = vmatpush1.msra.mxu0 0.0
    %58 = vmatprep.subr.mxu0 0.0
    %59 = vmatpush1.msra.mxu0 0.0
    %60 = vmatprep.subr.mxu0 0.0
    %61 = vmatpush1.msra.mxu0 0.0
    %62 = vmatprep.subr.mxu0 0.0
    %63 = vmatpush1.msra.mxu0 0.0
    %64 = vmatprep.subr.mxu0 0.0
    %65 = vmatpush1.msra.mxu0 0.0
    %66 = vmatprep.subr.mxu0 0.0
    %67 = vmatpush1.msra.mxu0 0.0
    %68 = vmatprep.subr.mxu0 0.0
    %69 = vmatpush1.msra.mxu0 0.0
    %70 = vmatprep.subr.mxu0 0.0
    %71 = vmatpush1.msra.mxu0 0.0
    %72 = vmatprep.subr.mxu0 0.0
    %73 = vmatpush1.msra.mxu0 0.0
    %74 = vmatprep.subr.mxu0 0.0
    %75 = vmatpush1.msra.mxu0 0.0
    %76 = vmatprep.subr.mxu0 0.0
    %77 = vmatpush1.msra.mxu0 0.0
    %78 = vmatprep.subr.mxu0 0.0
    %79 = vmatpush1.msra.mxu0 0.0
    %80 = vmatprep.subr.mxu0 0.0
    %81 = vmatpush1.msra.mxu0 0.0
    %82 = vmatprep.subr.mxu0 0.0
    %83 = vmatpush1.msra.mxu0 0.0
    %84 = vmatprep.subr.mxu0 0.0
    %85 = vmatpush1.msra.mxu0 0.0
    %86 = vmatprep.subr.mxu0 0.0
    %87 = vmatpush1.msra.mxu0 0.0
    %88 = vmatprep.subr.mxu0 0.0
    %89 = vmatpush1.msra.mxu0 0.0
    %90 = vmatprep.subr.mxu0 0.0
    %91 = vmatpush1.msra.mxu0 0.0
    %92 = vmatprep.subr.mxu0 0.0
    %93 = vmatpush1.msra.mxu0 0.0
    %94 = vmatprep.subr.mxu0 0.0
    %95 = vmatpush1.msra.mxu0 0.0
    %96 = vmatprep.subr.mxu0 0.0
    %97 = vmatpush1.msra.mxu0 0.0
    %98 = vmatprep.subr.mxu0 0.0
    %99 = vmatpush1.msra.mxu0 0.0
    %100 = vmatprep.mubr.f32.mxu0 0.0
    %101 = vmatmul.mubr.f32.gmra.mrb[0].mxu0 %v34
    %v102 = vpop.f32.mrb[0].mxu0
    %v103 = vadd.f32 0.0, %v102
    %v104 = vpop.f32.mrb[0].mxu0
    %105 = vdwg.mxu0
    %v106 = vmul.f32 %v103, %v103
    %vm107 = vcmask 253952
    %v108 = vsel %vm107, %v106, 0.0
    %109 = vadd.xlane.f32.xlu0 %v108
    %v110 = vpop.xlane.xlu0 %109
    %v111 = vrot.slane %v110, 4
    %v112 = vadd.f32 %v110, %v111
    %v113 = vrot.slane %v112, 2
    %v114 = vadd.f32 %v112, %v113
    %v115 = vrot.slane %v114, 1
    %v116 = vadd.f32 %v114, %v115
    %s117 = vtos %v116
    %v118 = vstv %s117
    %v119 = vmax.f32 %v118, 1e-24
    %v120 = vrsqrt.pop %v119
    %v121 = vmul.f32 %v103, %v120
    %vm122 = vcmask 261120
    %v124 = vsel %vm122, %v121, 0
    %v127 = vsel %vm122, %v29, 0
    %v130 = vsel %vm122, %v30, 0
    %132 = vmatprep.subr.mxu0 0.0
    %133 = vmatpush1.xpose.msra.mxu0 %v127
    %134 = vmatprep.subr.mxu0 0.0
    %135 = vmatpush1.xpose.msra.mxu0 %v130
    %136 = vmatprep.subr.mxu0 0.0
    %137 = vmatpush1.xpose.msra.mxu0 0.0
    %138 = vmatprep.subr.mxu0 0.0
    %139 = vmatpush1.xpose.msra.mxu0 0.0
    %140 = vmatprep.subr.mxu0 0.0
    %141 = vmatpush1.xpose.msra.mxu0 0.0
    %142 = vmatprep.subr.mxu0 0.0
    %143 = vmatpush1.xpose.msra.mxu0 0.0
    %144 = vmatprep.subr.mxu0 0.0
    %145 = vmatpush1.xpose.msra.mxu0 0.0
    %146 = vmatprep.subr.mxu0 0.0
    %147 = vmatpush1.xpose.msra.mxu0 0.0
    %148 = vmatprep.subr.mxu0 0.0
    %149 = vmatpush1.xpose.msra.mxu0 0.0
    %150 = vmatprep.subr.mxu0 0.0
    %151 = vmatpush1.xpose.msra.mxu0 0.0
    %152 = vmatprep.subr.mxu0 0.0
    %153 = vmatpush1.xpose.msra.mxu0 0.0
    %154 = vmatprep.subr.mxu0 0.0
    %155 = vmatpush1.xpose.msra.mxu0 0.0
    %156 = vmatprep.subr.mxu0 0.0
    %157 = vmatpush1.xpose.msra.mxu0 0.0
    %158 = vmatprep.subr.mxu0 0.0
    %159 = vmatpush1.xpose.msra.mxu0 0.0
    %160 = vmatprep.subr.mxu0 0.0
    %161 = vmatpush1.xpose.msra.mxu0 0.0
    %162 = vmatprep.subr.mxu0 0.0
    %163 = vmatpush1.xpose.msra.mxu0 0.0
    %164 = vmatprep.subr.mxu0 0.0
    %165 = vmatpush1.xpose.msra.mxu0 0.0
    %166 = vmatprep.subr.mxu0 0.0
    %167 = vmatpush1.xpose.msra.mxu0 0.0
    %168 = vmatprep.subr.mxu0 0.0
    %169 = vmatpush1.xpose.msra.mxu0 0.0
    %170 = vmatprep.subr.mxu0 0.0
    %171 = vmatpush1.xpose.msra.mxu0 0.0
    %172 = vmatprep.subr.mxu0 0.0
    %173 = vmatpush1.xpose.msra.mxu0 0.0
    %174 = vmatprep.subr.mxu0 0.0
    %175 = vmatpush1.xpose.msra.mxu0 0.0
    %176 = vmatprep.subr.mxu0 0.0
    %177 = vmatpush1.xpose.msra.mxu0 0.0
    %178 = vmatprep.subr.mxu0 0.0
    %179 = vmatpush1.xpose.msra.mxu0 0.0
    %180 = vmatprep.subr.mxu0 0.0
    %181 = vmatpush1.xpose.msra.mxu0 0.0
    %182 = vmatprep.subr.mxu0 0.0
    %183 = vmatpush1.xpose.msra.mxu0 0.0
    %184 = vmatprep.subr.mxu0 0.0
    %185 = vmatpush1.xpose.msra.mxu0 0.0
    %186 = vmatprep.subr.mxu0 0.0
    %187 = vmatpush1.xpose.msra.mxu0 0.0
    %188 = vmatprep.subr.mxu0 0.0
    %189 = vmatpush1.xpose.msra.mxu0 0.0
    %190 = vmatprep.subr.mxu0 0.0
    %191 = vmatpush1.xpose.msra.mxu0 0.0
    %192 = vmatprep.subr.mxu0 0.0
    %193 = vmatpush1.xpose.msra.mxu0 0.0
    %194 = vmatprep.subr.mxu0 0.0
    %195 = vmatpush1.xpose.msra.mxu0 0.0
    %196 = vmatprep.mubr.f32.mxu0 0.0
    %197 = vmatmul.mubr.f32.gmra.mrb[0].mxu0 %v124
    %v198 = vpop.f32.mrb[0].mxu0
    %v199 = vadd.f32 0.0, %v198
    %v200 = vpop.f32.mrb[0].mxu0
    %201 = vdwg.mxu0
    %v202 = vmul.f32 %v199, %v199
    %vm203 = vcmask 122880
    %v204 = vsel %vm203, %v202, 0.0
    %205 = vadd.xlane.f32.xlu0 %v204
    %v206 = vpop.xlane.xlu0 %205
    %v207 = vrot.slane %v206, 4
    %v208 = vadd.f32 %v206, %v207
    %v209 = vrot.slane %v208, 2
    %v210 = vadd.f32 %v208, %v209
    %v211 = vrot.slane %v210, 1
    %v212 = vadd.f32 %v210, %v211
    %s213 = vtos %v212
    %v214 = vstv %s213
    %v215 = vmax.f32 %v214, 1e-24
    %v216 = vrsqrt.pop %v215
    %v217 = vmul.f32 %v199, %v216
    %218 = vst.msk [vmem:[#allocation5] sm:$0x1] %vm203, %v217
    %vm219 = vcmask 0
    %220 = vst.msk [vmem:[#allocation6] sm:$0x1] %vm219, %v216
    // Predicated region
    $region14: #{spectral_norm_linear.2} parent=1 // pred_check
      _
    $region15: #{spectral_norm_linear.2} parent=1 // pred_check_branch
      %222 = sbr.rel (0) target = $region17
    $region16: #{spectral_norm_linear.2} parent=1 // pred_region
      %s224 = ssub.s32 16, 16
      %225 = vsyncadd [#allocation4], %s224
      %s227 = sshll.u32 [#allocation5], 4
      %s228 = int_to_ptr.vmem [resolvable:$true] %s227
      %230 = dma.vmem_to_hbm [thread:$0]  %s228, 16, %s2, [#allocation4]
    $region17: #{spectral_norm_linear.2} parent=1 // pred_fallthru
      _
    // Predicated region
    $region18: #{spectral_norm_linear.2} parent=1 // pred_check
      _
    $region19: #{spectral_norm_linear.2} parent=1 // pred_check_branch
      %232 = sbr.rel (0) target = $region21
    $region20: #{spectral_norm_linear.2} parent=1 // pred_region
      %s234 = ssub.s32 16, 16
      %235 = vsyncadd [#allocation7], %s234
      %s237 = sshll.u32 [#allocation6], 4
      %s238 = int_to_ptr.vmem [resolvable:$true] %s237
      %240 = dma.vmem_to_hbm [thread:$0]  %s238, 16, %s3, [#allocation7]
    $region21: #{spectral_norm_linear.2} parent=1 // pred_fallthru
      _
    // Predicated region
    $region22: #{spectral_norm_linear.2} parent=1 // pred_check
      _
    $region23: #{spectral_norm_linear.2} parent=1 // pred_check_branch
      %242 = sbr.rel (0) target = $region25
    $region24: #{spectral_norm_linear.2} parent=1 // pred_region
      %243 = dma.done [#allocation4], 16
    $region25: #{spectral_norm_linear.2} parent=1 // pred_fallthru
      _
    // Predicated region
    $region26: #{spectral_norm_linear.2} parent=1 // pred_check
      _
    $region27: #{spectral_norm_linear.2} parent=1 // pred_check_branch
      %245 = sbr.rel (0) target = $region29
    $region28: #{spectral_norm_linear.2} parent=1 // pred_region
      %246 = dma.done [#allocation7], 16
    $region29: #{spectral_norm_linear.2} parent=1 // pred_fallthru
      _
    %247 = vsyncpa [#allocation3], 1
    %248 = vsyncpa [#allocation4], 1
    %249 = vsyncpa [#allocation7], 1

// kernel: spectral_norm_linear.3
$region0: #{spectral_norm_linear.3}
  #allocation0 [shape = 'u32[]', space=smem, size = 0x4, offset = 0x4, fixed_abs, tag = 'smem constant byte address 0x4 - core index']
  #allocation1 [shape = 'u32[144,128]{1,0:T(1,128)}', space=vmem, size = 0x12000, scoped, tag = 'internal scratch']
  #allocation2 [shape = 'f32[8,128]{1,0:T(8,128)}', space=vmem, size = 0x1000, scoped, tag = 'scratch operand']
  #allocation3 [shape = 'f32[1,1]{1,0:T(1,128)S(6)}', space=smem, size = 0x200, scoped, tag = 'scoped memory for spectral_norm_linear.3']
  %s0 = inlined_call_operand.<no memory space> [shape: f32[1,1], index: 0, kind: input, shape index: {}]
  %s1 = inlined_call_operand.vmem [shape: f32[8,128], index: 1, kind: input, shape index: {}]
  %s2 = inlined_call_operand.vmem [shape: f32[128,128], index: 2, kind: input, shape index: {}]
  %s3 = inlined_call_operand.vmem [shape: f32[1,128], index: 3, kind: input, shape index: {}]
  %s4 = inlined_call_operand.hbm [shape: f32[8,128], index: 4, kind: output, shape index: {}]
  %s5 = sld [smem:[#allocation0]]
  $region34: #{spectral_norm_linear.3} parent=0
    _
  %s7 = ssub.s32 1, %s5
  %s8 = scalar_select 0, %s7, %s5
  %9 = sst [smem:[#allocation3]] %s0
  $region1: #{spectral_norm_linear.3} parent=0
    #allocation4 [shape = 'u8[4096]{0}', space=vmem, size = 0x1000, scoped, tag = 'output window, operand 0, single buffered']
    #allocation5 [shape = 's32[1]{0}', space=sflag, size = 0x4, scoped, tag = 'scoped memory for spectral_norm_linear.3']
    %10 = vsyncpa [#allocation5], 0
    // Predicated region
    $region2: #{spectral_norm_linear.3} parent=1 // pred_check
      _
    $region3: #{spectral_norm_linear.3} parent=1 // pred_check_branch
      %12 = sbr.rel (0) target = $region5
    $region4: #{spectral_norm_linear.3} parent=1 // pred_region
      _
    $region5: #{spectral_norm_linear.3} parent=1 // pred_fallthru
      _
    // Predicated region
    $region6: #{spectral_norm_linear.3} parent=1 // pred_check
      _
    $region7: #{spectral_norm_linear.3} parent=1 // pred_check_branch
      %14 = sbr.rel (0) target = $region9
    $region8: #{spectral_norm_linear.3} parent=1 // pred_region
      _
    $region9: #{spectral_norm_linear.3} parent=1 // pred_fallthru
      _
    // Predicated region
    $region10: #{spectral_norm_linear.3} parent=1 // pred_check
      _
    $region11: #{spectral_norm_linear.3} parent=1 // pred_check_branch
      %16 = sbr.rel (0) target = $region13
    $region12: #{spectral_norm_linear.3} parent=1 // pred_region
      _
    $region13: #{spectral_norm_linear.3} parent=1 // pred_fallthru
      _
    // Predicated region
    $region14: #{spectral_norm_linear.3} parent=1 // pred_check
      _
    $region15: #{spectral_norm_linear.3} parent=1 // pred_check_branch
      %18 = sbr.rel (0) target = $region17
    $region16: #{spectral_norm_linear.3} parent=1 // pred_region
      _
    $region17: #{spectral_norm_linear.3} parent=1 // pred_fallthru
      _
    %p19 = scmp.eq.s32.totalorder 0, 0
    // Predicated region
    $region18: #{spectral_norm_linear.3} parent=1 // pred_check
      %p20 = pneg %p19
    $region19: #{spectral_norm_linear.3} parent=1 // pred_check_branch
      %22 = sbr.rel (%p20) target = $region21
    $region20: #{spectral_norm_linear.3} parent=1 // pred_region
      %23 = vst [vmem:[#allocation2] sm:$0xff] 0.0
    $region21: #{spectral_norm_linear.3} parent=1 // pred_fallthru
      _
    %v24 = vld [vmem:[#allocation2] sm:$0xff]
    %v25 = vld [vmem:[%s1] sm:$0xff]
    %v26 = vld [vmem:[%s2] sm:$0xff]
    %v27 = vld [vmem:[%s2 + $0x8] sm:$0xff]
    %v28 = vld [vmem:[%s2 + $0x10] sm:$0xff]
    %v29 = vld [vmem:[%s2 + $0x18] sm:$0xff]
    %v30 = vld [vmem:[%s2 + $0x20] sm:$0xff]
    %v31 = vld [vmem:[%s2 + $0x28] sm:$0xff]
    %v32 = vld [vmem:[%s2 + $0x30] sm:$0xff]
    %v33 = vld [vmem:[%s2 + $0x38] sm:$0xff]
    %v34 = vld [vmem:[%s2 + $0x40] sm:$0xff]
    %v35 = vld [vmem:[%s2 + $0x48] sm:$0xff]
    %v36 = vld [vmem:[%s2 + $0x50] sm:$0xff]
    %v37 = vld [vmem:[%s2 + $0x58] sm:$0xff]
    %v38 = vld [vmem:[%s2 + $0x60] sm:$0xff]
    %v39 = vld [vmem:[%s2 + $0x68] sm:$0xff]
    %v40 = vld [vmem:[%s2 + $0x70] sm:$0xff]
    %v41 = vld [vmem:[%s2 + $0x78] sm:$0xff]
    %42 = vmatprep.subr.mxu0 0.0
    %43 = vmatpush1.xpose.msra.mxu0 %v26
    %44 = vmatprep.subr.mxu0 0.0
    %45 = vmatpush1.xpose.msra.mxu0 %v27
    %46 = vmatprep.subr.mxu0 0.0
    %47 = vmatpush1.xpose.msra.mxu0 %v28
    %48 = vmatprep.subr.mxu0 0.0
    %49 = vmatpush1.xpose.msra.mxu0 %v29
    %50 = vmatprep.subr.mxu0 0.0
    %51 = vmatpush1.xpose.msra.mxu0 %v30
    %52 = vmatprep.subr.mxu0 0.0
    %53 = vmatpush1.xpose.msra.mxu0 %v31
    %54 = vmatprep.subr.mxu0 0.0
    %55 = vmatpush1.xpose.msra.mxu0 %v32
    %56 = vmatprep.subr.mxu0 0.0
    %57 = vmatpush1.xpose.msra.mxu0 %v33
    %58 = vmatprep.subr.mxu0 0.0
    %59 = vmatpush1.xpose.msra.mxu0 %v34
    %60 = vmatprep.subr.mxu0 0.0
    %61 = vmatpush1.xpose.msra.mxu0 %v35
    %62 = vmatprep.subr.mxu0 0.0
    %63 = vmatpush1.xpose.msra.mxu0 %v36
    %64 = vmatprep.subr.mxu0 0.0
    %65 = vmatpush1.xpose.msra.mxu0 %v37
    %66 = vmatprep.subr.mxu0 0.0
    %67 = vmatpush1.xpose.msra.mxu0 %v38
    %68 = vmatprep.subr.mxu0 0.0
    %69 = vmatpush1.xpose.msra.mxu0 %v39
    %70 = vmatprep.subr.mxu0 0.0
    %71 = vmatpush1.xpose.msra.mxu0 %v40
    %72 = vmatprep.subr.mxu0 0.0
    %73 = vmatpush1.xpose.msra.mxu0 %v41
    %74 = vmatprep.subr.mxu0 0.0
    %75 = vmatpush1.xpose.msra.mxu0 0.0
    %76 = vmatprep.subr.mxu0 0.0
    %77 = vmatpush1.xpose.msra.mxu0 0.0
    %78 = vmatprep.subr.mxu0 0.0
    %79 = vmatpush1.xpose.msra.mxu0 0.0
    %80 = vmatprep.subr.mxu0 0.0
    %81 = vmatpush1.xpose.msra.mxu0 0.0
    %82 = vmatprep.subr.mxu0 0.0
    %83 = vmatpush1.xpose.msra.mxu0 0.0
    %84 = vmatprep.subr.mxu0 0.0
    %85 = vmatpush1.xpose.msra.mxu0 0.0
    %86 = vmatprep.subr.mxu0 0.0
    %87 = vmatpush1.xpose.msra.mxu0 0.0
    %88 = vmatprep.subr.mxu0 0.0
    %89 = vmatpush1.xpose.msra.mxu0 0.0
    %90 = vmatprep.subr.mxu0 0.0
    %91 = vmatpush1.xpose.msra.mxu0 0.0
    %92 = vmatprep.subr.mxu0 0.0
    %93 = vmatpush1.xpose.msra.mxu0 0.0
    %94 = vmatprep.subr.mxu0 0.0
    %95 = vmatpush1.xpose.msra.mxu0 0.0
    %96 = vmatprep.subr.mxu0 0.0
    %97 = vmatpush1.xpose.msra.mxu0 0.0
    %98 = vmatprep.subr.mxu0 0.0
    %99 = vmatpush1.xpose.msra.mxu0 0.0
    %100 = vmatprep.subr.mxu0 0.0
    %101 = vmatpush1.xpose.msra.mxu0 0.0
    %102 = vmatprep.subr.mxu0 0.0
    %103 = vmatpush1.xpose.msra.mxu0 0.0
    %104 = vmatprep.subr.mxu0 0.0
    %105 = vmatpush1.xpose.msra.mxu0 0.0
    %106 = vmatprep.mubr.f32.mxu0 0.0
    %107 = vmatmul.mubr.f32.gmra.mrb[0].mxu0 %v25
    %v108 = vpop.f32.mrb[0].mxu0
    %v109 = vadd.f32 0.0, %v108
    %v110 = vpop.f32.mrb[0].mxu0
    %111 = vdwg.mxu0
    %v112 = vadd.f32 %v24, %v109
    %113 = vst [vmem:[#allocation2] sm:$0xff] %v112
    // Predicated region
    $region22: #{spectral_norm_linear.3} parent=1 // pred_check
      %p114 = pneg %p19
    $region23: #{spectral_norm_linear.3} parent=1 // pred_check_branch
      %116 = sbr.rel (%p114) target = $region25
    $region24: #{spectral_norm_linear.3} parent=1 // pred_region
      %s117 = sld [smem:[#allocation3]]
      %v118 = vld [vmem:[#allocation2] sm:$0xff]
      %v119 = vstv %s117
      %v120 = vmul.f32 %v118, %v119
      %v121 = vld [vmem:[%s3] sm:$0x1]
      %v123 = vlaneseq
      %v124 = vshrl.u32 %v123, 7
      %v125 = vsub.s32 0, %v124
      %v126 = vrot.slane %v121, %v125
      %v128 = vadd.f32 %v120, %v126
      %129 = vst [vmem:[#allocation4] sm:$0xff] %v128
    $region25: #{spectral_norm_linear.3} parent=1 // pred_fallthru
      _
    // Predicated region
    $region26: #{spectral_norm_linear.3} parent=1 // pred_check
      _
    $region27: #{spectral_norm_linear.3} parent=1 // pred_check_branch
      %131 = sbr.rel (0) target = $region29
    $region28: #{spectral_norm_linear.3} parent=1 // pred_region
      %s133 = ssub.s32 128, 128
      %134 = vsyncadd [#allocation5], %s133
      %s136 = sshll.u32 [#allocation4], 4
      %s137 = int_to_ptr.vmem [resolvable:$true] %s136
      %139 = dma.vmem_to_hbm [thread:$0]  %s137, 128, %s4, [#allocation5]
    $region29: #{spectral_norm_linear.3} parent=1 // pred_fallthru
      _
    // Predicated region
    $region30: #{spectral_norm_linear.3} parent=1 // pred_check
      _
    $region31: #{spectral_norm_linear.3} parent=1 // pred_check_branch
      %141 = sbr.rel (0) target = $region33
    $region32: #{spectral_norm_linear.3} parent=1 // pred_region
      %142 = dma.done [#allocation5], 128
    $region33: #{spectral_norm_linear.3} parent=1 // pred_fallthru
      _
    %143 = vsyncpa [#allocation5], 1

</llo_original>
